<compile_context>
chip_gen: v7x
topology: tpu7x:2x2x1
jax: 0.10.0
libtpu: 0.0.40
codegen_flags: <defaults>
</compile_context>

<pallas_src>
import functools

import jax
import jax.numpy as jnp
from jax import lax
from jax.experimental import pallas as pl
from jax.experimental.pallas import tpu as pltpu

# ~1M f32 elements (~4 MiB) per input per grid step.  Budget: 2 inputs x 2
# pipeline buffers x 4 MiB (+ output block) < 48 MiB scoped VMEM on every
# generation (v7x physical VMEM 64 MiB; v5e/v6e 128 MiB).
_BLOCK_ELEMS = 1024 * 1024
_VMEM_LIMIT_BYTES = 48 * 1024 * 1024


def _focal_terms(pred, tgt, alpha, gamma):
    """Elementwise binary focal loss; matches the PyTorch module in float32."""
    pred = pred.astype(jnp.float32)
    tgt = tgt.astype(jnp.float32)
    p = jax.nn.sigmoid(pred)
    p = jnp.clip(p, 1e-8, 1.0 - 1e-8)
    one_m_p = 1.0 - p
    if gamma == 2:                        # specialize: multiply, never a pow
        w1 = one_m_p * one_m_p
        w2 = p * p
    else:
        w1 = one_m_p ** gamma
        w2 = p ** gamma
    term1 = tgt * w1 * jnp.log(p)
    term2 = (1.0 - tgt) * w2 * jnp.log(one_m_p)
    return -alpha * term1 - (1.0 - alpha) * term2


def _fold_lanes(x):
    """(8, lanes) -> (8, 128) by summing 128-lane groups (static, vreg-aligned slices)."""
    lanes = x.shape[1]
    acc = x[:, 0:128]
    for g in range(1, lanes // 128):
        acc = acc + x[:, g * 128:(g + 1) * 128]
    return acc


def _focal_sum_kernel(pred_ref, tgt_ref, out_ref, *, alpha, gamma, rows,
                      block_rows, ragged):
    """Per-grid-step partial sum.

    Streams (8, lanes) strips through the focal-loss math and folds each strip
    into an (8, 128) accumulator, so no block-sized f32 temp is materialized.
    `ragged` (static) enables per-block valid-row handling: full strips run
    mask-free; at most one row-masked tail strip runs (only in the last block).
    """

    def strip_loss(s):
        r = pl.multiple_of(s * 8, 8)
        return _focal_terms(pred_ref[pl.ds(r, 8), :], tgt_ref[pl.ds(r, 8), :],
                            alpha, gamma)

    def body(s, acc):
        return acc + _fold_lanes(strip_loss(s))

    zero = jnp.zeros((8, 128), jnp.float32)

    if not ragged:
        out_ref[...] = lax.fori_loop(0, block_rows // 8, body, zero)
        return

    i = pl.program_id(0)
    valid = jnp.minimum(rows - i * block_rows, block_rows)  # valid rows in this block
    n_full = valid // 8
    rem = valid - n_full * 8
    acc = lax.fori_loop(0, n_full, body, zero)

    @pl.when(rem == 0)
    def _():
        out_ref[...] = acc

    @pl.when(rem > 0)   # only the last grid step can take this path
    def _():
        loss = strip_loss(n_full)          # garbage rows masked out below
        rowi = lax.broadcasted_iota(jnp.int32, loss.shape, 0)
        out_ref[...] = acc + _fold_lanes(jnp.where(rowi < rem, loss, 0.0))


def _focal_none_kernel(pred_ref, tgt_ref, out_ref, *, alpha, gamma, n_strips):
    """Elementwise loss, computed strip-by-strip so intermediates stay (8, lanes).

    Out-of-range strips of a ragged last block compute garbage into VMEM that
    Pallas never writes back (edge blocks write only the valid window)."""

    @pl.loop(0, n_strips)
    def _(s):
        r = pl.multiple_of(s * 8, 8)
        out_ref[pl.ds(r, 8), :] = _focal_terms(
            pred_ref[pl.ds(r, 8), :], tgt_ref[pl.ds(r, 8), :], alpha, gamma
        ).astype(out_ref.dtype)


def binary_focal_loss(predictions, targets, alpha=0.25, gamma=2, reduction="sum"):
    if reduction not in ("sum", "mean", "none"):
        raise ValueError(f"Invalid reduction type: {reduction}")
    alpha = float(alpha)

    orig_shape = predictions.shape
    total = int(predictions.size)
    p_flat = predictions.reshape(-1)
    t_flat = targets.reshape(-1)

    # Lane width: largest of {1024,512,256,128} dividing `total` with rows >= 8,
    # so the flat array reshapes (zero-copy) into a lane-dense (rows, lanes) slab.
    lanes = next((c for c in (1024, 512, 256, 128)
                  if total % c == 0 and total >= 8 * c), 0)
    if lanes:
        main, rem = total, 0
    elif total >= 8 * 128:
        # Rare: total not a multiple of 128.  Kernel over the 128-aligned
        # prefix; finish the (<128-element) tail with plain XLA.
        lanes = 128
        rem = total % 128
        main = total - rem
    else:
        lanes, main, rem = 0, 0, total      # tiny input: pure XLA below

    if main == 0:
        loss = _focal_terms(p_flat, t_flat, alpha, gamma)
        if reduction == "sum":
            return jnp.sum(loss)
        if reduction == "mean":
            return jnp.mean(loss)
        return loss.reshape(orig_shape)

    rows = main // lanes
    p2d = (p_flat[:main] if rem else p_flat).reshape(rows, lanes)
    t2d = (t_flat[:main] if rem else t_flat).reshape(rows, lanes)

    # Block sizing: ~_BLOCK_ELEMS per input per step, balanced across blocks,
    # and >= 2 blocks whenever rows > 8 so the 'parallel' axis can shard across
    # both TensorCores on megacore parts (v7x).
    rows8 = -(-rows // 8) * 8
    target_rows = max(8, (_BLOCK_ELEMS // lanes) // 8 * 8)
    num_splits = max(1, -(-rows8 // target_rows))
    if rows8 > 8:
        num_splits = max(num_splits, 2)
    block_rows = max(8, (-(-rows // num_splits) + 7) // 8 * 8)
    num_blocks = -(-rows // block_rows)
    ragged = (rows % block_rows) != 0

    in_spec = pl.BlockSpec((block_rows, lanes), lambda i: (i, 0))
    cparams = pltpu.CompilerParams(
        dimension_semantics=("parallel",),
        vmem_limit_bytes=_VMEM_LIMIT_BYTES,
    )

    if reduction in ("sum", "mean"):
        partials = pl.pallas_call(
            functools.partial(_focal_sum_kernel, alpha=alpha, gamma=gamma,
                              rows=rows, block_rows=block_rows, ragged=ragged),
            out_shape=jax.ShapeDtypeStruct((num_blocks * 8, 128), jnp.float32),
            grid=(num_blocks,),
            in_specs=[in_spec, in_spec],
            out_specs=pl.BlockSpec((8, 128), lambda i: (i, 0)),
            compiler_params=cparams,
        )(p2d, t2d)
        loss_sum = jnp.sum(partials)          # tiny XLA epilogue
        if rem:
            loss_sum = loss_sum + jnp.sum(
                _focal_terms(p_flat[main:], t_flat[main:], alpha, gamma))
        if reduction == "sum":
            return loss_sum
        return loss_sum / jnp.float32(total)

    # reduction == 'none': elementwise, lane-dense f32 output slab.
    out2d = pl.pallas_call(
        functools.partial(_focal_none_kernel, alpha=alpha, gamma=gamma,
                          n_strips=block_rows // 8),
        out_shape=jax.ShapeDtypeStruct((rows, lanes), jnp.float32),
        grid=(num_blocks,),
        in_specs=[in_spec, in_spec],
        out_specs=in_spec,
        compiler_params=cparams,
    )(p2d, t2d)
    if rem:
        tail = _focal_terms(p_flat[main:], t_flat[main:], alpha, gamma)
        return jnp.concatenate([out2d.reshape(-1), tail]).reshape(orig_shape)
    return out2d.reshape(orig_shape)


def _reference(predictions, targets, alpha=0.25, gamma=2, reduction="sum"):
    loss = _focal_terms(predictions, targets, alpha, gamma)
    if reduction == "sum":
        return jnp.sum(loss)
    if reduction == "mean":
        return jnp.mean(loss)
    return loss


if __name__ == "__main__":
    key = jax.random.PRNGKey(0)
    k1, k2, k3, k4 = jax.random.split(key, 4)

    # Small NCHW heatmap-like logits / sparse binary targets (TrackNet usage).
    x = jax.random.normal(k1, (2, 4, 16, 16), dtype=jnp.float32)
    y = (jax.random.uniform(k2, (2, 4, 16, 16)) > 0.9).astype(jnp.float32)

    s = jax.block_until_ready(binary_focal_loss(x, y, reduction="sum"))
    s_ref = _reference(x, y, reduction="sum")
    assert jnp.allclose(s, s_ref, rtol=1e-4, atol=1e-5), (s, s_ref)

    m = jax.block_until_ready(binary_focal_loss(x, y, reduction="mean"))
    m_ref = _reference(x, y, reduction="mean")
    assert jnp.allclose(m, m_ref, rtol=1e-4, atol=1e-6), (m, m_ref)

    n = jax.block_until_ready(binary_focal_loss(x, y, reduction="none"))
    n_ref = _reference(x, y, reduction="none")
    assert n.shape == x.shape
    assert jnp.allclose(n, n_ref, rtol=1e-5, atol=1e-6)

    # Larger TrackNet-like shape whose element count is NOT divisible by 8*1024:
    # exercises the zero-copy ragged path (lanes=512, rows=2025), a balanced
    # 2-block megacore-friendly grid, and the in-kernel row-masked tail strip.
    x2 = jax.random.normal(k3, (2, 9, 180, 320), dtype=jnp.float32)
    y2 = (jax.random.uniform(k4, (2, 9, 180, 320)) > 0.97).astype(jnp.float32)
    s2 = jax.block_until_ready(binary_focal_loss(x2, y2, reduction="sum"))
    s2_ref = _reference(x2, y2, reduction="sum")
    assert jnp.allclose(s2, s2_ref, rtol=5e-4), (s2, s2_ref)

    n2 = jax.block_until_ready(binary_focal_loss(x2, y2, reduction="none"))
    assert n2.shape == x2.shape
    assert jnp.allclose(n2, _reference(x2, y2, reduction="none"),
                        rtol=1e-5, atol=1e-6)

    print("KERNEL_OK")
</pallas_src>

<mosaic_0001>
module attributes {stable_mosaic.version = 11 : i64} {
  func.func @_focal_sum_kernel(%arg0: i32, %arg1: memref<8x256xf32, #tpu.memory_space<vmem>>, %arg2: memref<8x256xf32, #tpu.memory_space<vmem>>, %arg3: memref<8x128xf32, #tpu.memory_space<vmem>>) attributes {dimension_semantics = [#tpu.dimension_semantics<parallel>], iteration_bounds = array<i64: 1>, scalar_prefetch = 0 : i64, scratch_operands = 0 : i64, tpu.core_type = #tpu.core_type<tc>, window_params = [{transform_indices = @transform_0, window_bounds = array<i64: 8, 256>}, {transform_indices = @transform_1, window_bounds = array<i64: 8, 256>}, {transform_indices = @transform_2, window_bounds = array<i64: 8, 128>}]} {
    %cst = arith.constant 0.000000e+00 : f32
    %0 = vector.broadcast %cst : f32 to vector<8x128xf32>
    %c0_i32 = arith.constant 0 : i32
    %c8_i32 = arith.constant 8 : i32
    %1 = arith.muli %c0_i32, %c8_i32 : i32
    %2 = tpu.assume_multiple %1, 8 : i32
    %3 = arith.index_cast %2 : i32 to index
    %c0 = arith.constant 0 : index
    %4 = vector.load %arg1[%3, %c0] : memref<8x256xf32, #tpu.memory_space<vmem>>, vector<8x256xf32>
    %5 = arith.index_cast %2 : i32 to index
    %c0_0 = arith.constant 0 : index
    %6 = vector.load %arg2[%5, %c0_0] : memref<8x256xf32, #tpu.memory_space<vmem>>, vector<8x256xf32>
    %7 = arith.negf %4 : vector<8x256xf32>
    %8 = math.exp %7 : vector<8x256xf32>
    %cst_1 = arith.constant 1.000000e+00 : f32
    %9 = vector.broadcast %cst_1 : f32 to vector<8x256xf32>
    %10 = arith.addf %9, %8 : vector<8x256xf32>
    %11 = arith.divf %9, %10 : vector<8x256xf32>
    %cst_2 = arith.constant 9.99999993E-9 : f32
    %cst_3 = arith.constant 1.000000e+00 : f32
    %12 = vector.broadcast %cst_2 : f32 to vector<8x256xf32>
    %13 = arith.maximumf %12, %11 : vector<8x256xf32>
    %14 = vector.broadcast %cst_3 : f32 to vector<8x256xf32>
    %15 = arith.minimumf %14, %13 : vector<8x256xf32>
    %cst_4 = arith.constant 1.000000e+00 : f32
    %16 = vector.broadcast %cst_4 : f32 to vector<8x256xf32>
    %17 = arith.subf %16, %15 : vector<8x256xf32>
    %18 = arith.mulf %17, %17 : vector<8x256xf32>
    %19 = arith.mulf %15, %15 : vector<8x256xf32>
    %20 = arith.mulf %6, %18 : vector<8x256xf32>
    %21 = math.log %15 : vector<8x256xf32>
    %22 = arith.mulf %20, %21 : vector<8x256xf32>
    %cst_5 = arith.constant 1.000000e+00 : f32
    %23 = vector.broadcast %cst_5 : f32 to vector<8x256xf32>
    %24 = arith.subf %23, %6 : vector<8x256xf32>
    %25 = arith.mulf %24, %19 : vector<8x256xf32>
    %26 = math.log %17 : vector<8x256xf32>
    %27 = arith.mulf %25, %26 : vector<8x256xf32>
    %cst_6 = arith.constant -2.500000e-01 : f32
    %28 = vector.broadcast %cst_6 : f32 to vector<8x256xf32>
    %29 = arith.mulf %28, %22 : vector<8x256xf32>
    %cst_7 = arith.constant 7.500000e-01 : f32
    %30 = vector.broadcast %cst_7 : f32 to vector<8x256xf32>
    %31 = arith.mulf %30, %27 : vector<8x256xf32>
    %32 = arith.subf %29, %31 : vector<8x256xf32>
    %33 = vector.extract_strided_slice %32 {offsets = [0, 0], sizes = [8, 128], strides = [1, 1]} : vector<8x256xf32> to vector<8x128xf32>
    %34 = vector.extract_strided_slice %32 {offsets = [0, 128], sizes = [8, 128], strides = [1, 1]} : vector<8x256xf32> to vector<8x128xf32>
    %35 = arith.addf %33, %34 : vector<8x128xf32>
    %36 = arith.addf %0, %35 : vector<8x128xf32>
    %c1_i32 = arith.constant 1 : i32
    %c0_8 = arith.constant 0 : index
    %c0_9 = arith.constant 0 : index
    %37 = vector.load %arg3[%c0_8, %c0_9] : memref<8x128xf32, #tpu.memory_space<vmem>>, vector<8x128xf32>
    tpu.vector_store %arg3[%c0_8, %c0_9], %36 {strides = array<i32>} : memref<8x128xf32, #tpu.memory_space<vmem>>, vector<8x128xf32>,
    return
  }
  func.func @transform_0(%arg0: i32) -> (i32, i32) {
    %c0_i32 = arith.constant 0 : i32
    %c0_i32_0 = arith.constant 0 : i32
    return %arg0, %c0_i32 : i32, i32
  }
  func.func @transform_1(%arg0: i32) -> (i32, i32) {
    %c0_i32 = arith.constant 0 : i32
    %c0_i32_0 = arith.constant 0 : i32
    return %arg0, %c0_i32 : i32, i32
  }
  func.func @transform_2(%arg0: i32) -> (i32, i32) {
    %c0_i32 = arith.constant 0 : i32
    %c0_i32_0 = arith.constant 0 : i32
    return %arg0, %c0_i32 : i32, i32
  }
}

</mosaic_0001>

<llo_original>
// kernel: tpu_custom_call.1
$region0: #{tpu_custom_call.1}
  #allocation0 [shape = 'u32[]', space=smem, size = 0x4, offset = 0x4, fixed_abs, tag = 'smem constant byte address 0x4 - core index']
  #allocation1 [shape = 'u32[144,128]{1,0:T(1,128)}', space=vmem, size = 0x12000, scoped, tag = 'internal scratch']
  %s0 = inlined_call_operand.hbm [shape: f32[8,256], index: 0, kind: input, shape index: {}]
  %s1 = inlined_call_operand.hbm [shape: f32[8,256], index: 1, kind: input, shape index: {}]
  %s2 = inlined_call_operand.hbm [shape: f32[8,128], index: 2, kind: output, shape index: {}]
  %s3 = sld [smem:[#allocation0]]
  $region26: #{tpu_custom_call.1} parent=0
    _
  %s5 = ssub.s32 1, %s3
  %s6 = scalar_select 0, %s5, %s3
  $region1: #{tpu_custom_call.1} parent=0
    #allocation2 [shape = 'u8[8192]{0}', space=vmem, size = 0x2000, scoped, tag = 'input window, operand 0, single buffered']
    #allocation3 [shape = 's32[1]{0}', space=sflag, size = 0x4, scoped, tag = 'scoped memory for tpu_custom_call.1']
    #allocation4 [shape = 's32[1]{0}', space=sflag, size = 0x4, scoped, tag = 'scoped memory for tpu_custom_call.1']
    #allocation5 [shape = 'u8[8192]{0}', space=vmem, size = 0x2000, scoped, tag = 'input window, operand 1, single buffered']
    #allocation6 [shape = 's32[1]{0}', space=sflag, size = 0x4, scoped, tag = 'scoped memory for tpu_custom_call.1']
    #allocation7 [shape = 'u8[4096]{0}', space=vmem, size = 0x1000, scoped, tag = 'output window, operand 0, single buffered']
    %7 = vsyncpa [#allocation3], 0
    %8 = vsyncpa [#allocation6], 0
    %9 = vsyncpa [#allocation4], 0
    // Predicated region
    $region2: #{tpu_custom_call.1} parent=1 // pred_check
      _
    $region3: #{tpu_custom_call.1} parent=1 // pred_check_branch
      %11 = sbr.rel (0) target = $region5
    $region4: #{tpu_custom_call.1} parent=1 // pred_region
      %s13 = ssub.s32 256, 256
      %14 = vsyncadd [#allocation3], %s13
      %s16 = sshll.u32 [#allocation2], 4
      %s17 = int_to_ptr.vmem [resolvable:$true] %s16
      %19 = dma.hbm_to_vmem [thread:$0]  %s0, 256, %s17, [#allocation3]
    $region5: #{tpu_custom_call.1} parent=1 // pred_fallthru
      _
    // Predicated region
    $region6: #{tpu_custom_call.1} parent=1 // pred_check
      _
    $region7: #{tpu_custom_call.1} parent=1 // pred_check_branch
      %21 = sbr.rel (0) target = $region9
    $region8: #{tpu_custom_call.1} parent=1 // pred_region
      %s23 = ssub.s32 256, 256
      %24 = vsyncadd [#allocation6], %s23
      %s26 = sshll.u32 [#allocation5], 4
      %s27 = int_to_ptr.vmem [resolvable:$true] %s26
      %29 = dma.hbm_to_vmem [thread:$0]  %s1, 256, %s27, [#allocation6]
    $region9: #{tpu_custom_call.1} parent=1 // pred_fallthru
      _
    // Predicated region
    $region10: #{tpu_custom_call.1} parent=1 // pred_check
      _
    $region11: #{tpu_custom_call.1} parent=1 // pred_check_branch
      %31 = sbr.rel (0) target = $region13
    $region12: #{tpu_custom_call.1} parent=1 // pred_region
      %32 = dma.done [#allocation3], 256
    $region13: #{tpu_custom_call.1} parent=1 // pred_fallthru
      _
    // Predicated region
    $region14: #{tpu_custom_call.1} parent=1 // pred_check
      _
    $region15: #{tpu_custom_call.1} parent=1 // pred_check_branch
      %34 = sbr.rel (0) target = $region17
    $region16: #{tpu_custom_call.1} parent=1 // pred_region
      %35 = dma.done [#allocation6], 256
    $region17: #{tpu_custom_call.1} parent=1 // pred_fallthru
      _
    %s36 = smul.u32 0, 2
    %s37 = smul.addr %s36, 8
    %s38 = scalar_lea.vmem [#allocation2], %s37
    %v39 = vld [vmem:[%s38] sm:$0xff]
    %v40 = vld [vmem:[%s38 + $0x8] sm:$0xff]
    %s41 = smul.addr %s36, 8
    %s42 = scalar_lea.vmem [#allocation5], %s41
    %v43 = vld [vmem:[%s42] sm:$0xff]
    %v44 = vld [vmem:[%s42 + $0x8] sm:$0xff]
    %v45 = vxor.u32 %v39, 2147483648
    %v46 = vxor.u32 %v40, 2147483648
    %v47 = vmul.f32 %v45, 1.442695
    %v48 = vpow.pop %v47
    %v49 = vmul.f32 %v46, 1.442695
    %v50 = vpow.pop %v49
    %v51 = vadd.f32 %v48, 1.0
    %v52 = vadd.f32 %v50, 1.0
    %v53 = vrcp.pop %v51
    %v54 = vmul.f32 1.0, %v53
    %v55 = vrcp.pop %v52
    %v56 = vmul.f32 1.0, %v55
    %v57 = vmax.f32 %v54, 1e-08
    %v58 = vmax.f32 %v56, 1e-08
    %v59 = vmin.f32 %v57, 1.0
    %v60 = vmin.f32 %v58, 1.0
    %v61 = vsub.f32 1.0, %v59
    %v62 = vsub.f32 1.0, %v60
    %v63 = vmul.f32 %v61, %v61
    %v64 = vmul.f32 %v62, %v62
    %v65 = vmul.f32 %v59, %v59
    %v66 = vmul.f32 %v60, %v60
    %v67 = vmul.f32 %v43, %v63
    %v68 = vmul.f32 %v44, %v64
    %v69 = vlog2.pop %v59
    %v70 = vmul.f32 %v69, 0.6931472
    %v71 = vlog2.pop %v60
    %v72 = vmul.f32 %v71, 0.6931472
    %v73 = vmul.f32 %v67, %v70
    %v74 = vmul.f32 %v68, %v72
    %v75 = vsub.f32 1.0, %v43
    %v76 = vsub.f32 1.0, %v44
    %v77 = vmul.f32 %v75, %v65
    %v78 = vmul.f32 %v76, %v66
    %v79 = vlog2.pop %v61
    %v80 = vmul.f32 %v79, 0.6931472
    %v81 = vlog2.pop %v62
    %v82 = vmul.f32 %v81, 0.6931472
    %v83 = vmul.f32 %v77, %v80
    %v84 = vmul.f32 %v78, %v82
    %v85 = vmul.f32 %v73, -0.25
    %v86 = vmul.f32 %v74, -0.25
    %v87 = vmul.f32 %v83, 0.75
    %v88 = vmul.f32 %v84, 0.75
    %v89 = vsub.f32 %v85, %v87
    %v90 = vsub.f32 %v86, %v88
    %v91 = vadd.f32 %v89, %v90
    %v92 = vadd.f32 %v91, 0.0
    %93 = vst [vmem:[#allocation7] sm:$0xff] %v92
    // Predicated region
    $region18: #{tpu_custom_call.1} parent=1 // pred_check
      _
    $region19: #{tpu_custom_call.1} parent=1 // pred_check_branch
      %95 = sbr.rel (0) target = $region21
    $region20: #{tpu_custom_call.1} parent=1 // pred_region
      %s97 = ssub.s32 128, 128
      %98 = vsyncadd [#allocation4], %s97
      %s100 = sshll.u32 [#allocation7], 4
      %s101 = int_to_ptr.vmem [resolvable:$true] %s100
      %103 = dma.vmem_to_hbm [thread:$0]  %s101, 128, %s2, [#allocation4]
    $region21: #{tpu_custom_call.1} parent=1 // pred_fallthru
      _
    // Predicated region
    $region22: #{tpu_custom_call.1} parent=1 // pred_check
      _
    $region23: #{tpu_custom_call.1} parent=1 // pred_check_branch
      %105 = sbr.rel (0) target = $region25
    $region24: #{tpu_custom_call.1} parent=1 // pred_region
      %106 = dma.done [#allocation4], 128
    $region25: #{tpu_custom_call.1} parent=1 // pred_fallthru
      _
    %107 = vsyncpa [#allocation3], 1
    %108 = vsyncpa [#allocation6], 1
    %109 = vsyncpa [#allocation4], 1

</llo_original>
